<compile_context>
chip_gen: v5e
topology: v5e:2x2
jax: 0.10.0
libtpu: 0.0.40
codegen_flags: <defaults>
</compile_context>

<pallas_src>
import numpy as np
import jax
import jax.numpy as jnp
from jax.experimental import pallas as pl
from jax.experimental.pallas import tpu as pltpu


# ---------------------------------------------------------------------- kernel
def make_decoder_kernel(n_hidden_layers):
    """Fused kernel: MLP -> difference-Linear -> hard gumbel-softmax bits.

    refs layout:
      [ z,                               # bf16 [TB, latent]
        (w_i, b_i) * n_hidden_layers,    # bf16 weights, f32 biases
        w_diff, b_diff,                  # bf16 [hidden, K_pad], f32 [1, K_pad]
        g_diff,                          # f32  [TB, K_pad]  (gumbel0 - gumbel1)
        out ]                            # bf16 [TB, K_pad]  0/1 channel-0 bits
    """
    def kernel(*refs):
        h = refs[0][...]                                   # bf16 activations
        idx = 1
        for _ in range(n_hidden_layers):
            w = refs[idx][...]                             # bf16
            b = refs[idx + 1][...]                         # f32
            idx += 2
            h = jnp.maximum(
                jnp.dot(h, w, preferred_element_type=jnp.float32) + b, 0.0)
            h = h.astype(jnp.bfloat16)

        w_diff = refs[idx][...]                            # bf16 [hidden, K_pad]
        b_diff = refs[idx + 1][...]                        # f32  [1, K_pad]
        g_diff = refs[idx + 2][...]                        # f32  [TB, K_pad]
        out_ref = refs[idx + 3]

        # 2-way hard gumbel-softmax, channel 0 kept:
        #   argmax == 0  <=>  (logit0 + g0) - (logit1 + g1) >= 0
        logit_diff = (jnp.dot(h, w_diff, preferred_element_type=jnp.float32)
                      + b_diff + g_diff)
        out_ref[...] = jnp.where(logit_diff >= 0.0, 1.0, 0.0).astype(out_ref.dtype)
    return kernel


# ---------------------------------------------------------------------- params
def linear_params(key, fan_in, fan_out):
    """torch.nn.Linear default init; stored as (in, out) so the kernel does h @ W."""
    kw, kb = jax.random.split(key)
    bound = 1.0 / np.sqrt(fan_in)
    w = jax.random.uniform(kw, (fan_in, fan_out), jnp.float32, -bound, bound)
    b = jax.random.uniform(kb, (1, fan_out), jnp.float32, -bound, bound)
    return w, b


def init_params(key, latent_dim, hidden_dim, n_layers, n_nodes, lane=128):
    keys = jax.random.split(key, n_layers)
    hidden = []
    in_dim = latent_dim
    for i in range(n_layers - 1):
        w, b = linear_params(keys[i], in_dim, hidden_dim)
        hidden.append((w.astype(jnp.bfloat16), b))
        in_dim = hidden_dim

    K = n_nodes * (n_nodes - 1) // 2
    k_pad = max(lane, ((K + lane - 1) // lane) * lane)
    w, b = linear_params(keys[-1], hidden_dim, 2 * K)
    # difference Linear (channel-0 column minus channel-1 column), computed in
    # f32 before the bf16 cast, lane-padded to k_pad with zeros.
    w_diff = jnp.pad(w[:, 0::2] - w[:, 1::2], ((0, 0), (0, k_pad - K)))
    b_diff = jnp.pad(b[:, 0::2] - b[:, 1::2], ((0, 0), (0, k_pad - K)))
    return {'hidden': hidden,
            'diff': (w_diff.astype(jnp.bfloat16), b_diff),
            'K': K, 'K_pad': k_pad}


# --------------------------------------------------------------------- forward
def decoder_forward(params, z, gumbel, n_nodes, tb=16):
    """z: [B, latent] f32, gumbel: [B, K, 2] f32 -> adjacency [B, n, n] f32."""
    B, latent = z.shape
    K, k_pad = params['K'], params['K_pad']
    w_diff, b_diff = params['diff']
    hidden = params['hidden']

    b_pad = ((B + tb - 1) // tb) * tb                       # sublane-pad batch
    z_p = jnp.pad(z, ((0, b_pad - B), (0, 0))).astype(jnp.bfloat16)
    g_diff = gumbel[:, :, 0] - gumbel[:, :, 1]              # f32 [B, K]
    g_diff = jnp.pad(g_diff, ((0, b_pad - B), (0, k_pad - K)))

    inputs = [z_p]
    in_specs = [pl.BlockSpec((tb, latent), lambda i: (i, 0))]
    for (w, b) in hidden:                                   # weights stay resident
        inputs += [w, b]
        in_specs += [pl.BlockSpec(w.shape, lambda i: (0, 0)),
                     pl.BlockSpec(b.shape, lambda i: (0, 0))]
    inputs += [w_diff, b_diff, g_diff]
    in_specs += [pl.BlockSpec(w_diff.shape, lambda i: (0, 0)),
                 pl.BlockSpec(b_diff.shape, lambda i: (0, 0)),
                 pl.BlockSpec((tb, k_pad), lambda i: (i, 0))]

    # VMEM budget: double-buffered tiles + resident weights (+ headroom), capped
    # below v7x's 64 MiB physical VMEM.
    resident = sum(int(np.prod(a.shape)) * a.dtype.itemsize for a in inputs)
    resident += b_pad * k_pad * 2                           # bf16 output
    vmem_limit = int(min(max(4 * resident, 16 * 2**20), 48 * 2**20))

    upper_pad = pl.pallas_call(
        make_decoder_kernel(len(hidden)),
        out_shape=jax.ShapeDtypeStruct((b_pad, k_pad), jnp.bfloat16),
        grid=(b_pad // tb,),
        in_specs=in_specs,
        out_specs=pl.BlockSpec((tb, k_pad), lambda i: (i, 0)),
        compiler_params=pltpu.CompilerParams(
            dimension_semantics=("parallel",),
            vmem_limit_bytes=vmem_limit),
    )(*inputs)

    # Strict-upper-triangle scatter + symmetrize: trivial mem-bound gather of
    # B*K values, done in plain JAX (keeps the kernel O(n^2), not O(n^4)).
    upper = upper_pad[:B, :K].astype(jnp.float32)
    iu, ju = np.triu_indices(n_nodes, k=1)
    adj = jnp.zeros((B, n_nodes, n_nodes), jnp.float32)
    adj = adj.at[:, iu, ju].set(upper)
    adj = adj + jnp.transpose(adj, (0, 2, 1))
    return adj


# ------------------------------------------------------------------------ main
if __name__ == "__main__":
    latent_dim, hidden_dim = 16, 32
    n_layers, n_nodes = 3, 8
    B = 2
    K = n_nodes * (n_nodes - 1) // 2

    key = jax.random.PRNGKey(0)
    k_param, k_z, k_g = jax.random.split(key, 3)

    params = init_params(k_param, latent_dim, hidden_dim, n_layers, n_nodes)

    # latent input
    z = jax.random.normal(k_z, (B, latent_dim), jnp.float32)

    # gumbel noise for F.gumbel_softmax (deterministic given the seed)
    gumbel = jax.random.gumbel(k_g, (B, K, 2), jnp.float32)

    adj = decoder_forward(params, z, gumbel, n_nodes)
    adj = jax.block_until_ready(adj)

    # structural checks: shape, symmetry, binary entries, zero diagonal
    assert adj.shape == (B, n_nodes, n_nodes)
    assert bool(jnp.all(adj == jnp.transpose(adj, (0, 2, 1))))
    assert bool(jnp.all((adj == 0.0) | (adj == 1.0)))
    assert bool(jnp.all(jnp.diagonal(adj, axis1=1, axis2=2) == 0.0))
    print("KERNEL_OK")
</pallas_src>

<mosaic_0001>
module attributes {stable_mosaic.version = 11 : i64} {
  func.func @kernel(%arg0: i32, %arg1: memref<16x16xbf16, #tpu.memory_space<vmem>>, %arg2: memref<16x32xbf16, #tpu.memory_space<vmem>>, %arg3: memref<1x32xf32, #tpu.memory_space<vmem>>, %arg4: memref<32x32xbf16, #tpu.memory_space<vmem>>, %arg5: memref<1x32xf32, #tpu.memory_space<vmem>>, %arg6: memref<32x128xbf16, #tpu.memory_space<vmem>>, %arg7: memref<1x128xf32, #tpu.memory_space<vmem>>, %arg8: memref<16x128xf32, #tpu.memory_space<vmem>>, %arg9: memref<16x128xbf16, #tpu.memory_space<vmem>>) attributes {dimension_semantics = [#tpu.dimension_semantics<parallel>], iteration_bounds = array<i64: 1>, scalar_prefetch = 0 : i64, scratch_operands = 0 : i64, tpu.core_type = #tpu.core_type<tc>, window_params = [{transform_indices = @transform_0, window_bounds = array<i64: 16, 16>}, {pipeline_mode = #tpu.pipeline_mode<synchronous>, transform_indices = @transform_1, window_bounds = array<i64: 16, 32>}, {pipeline_mode = #tpu.pipeline_mode<synchronous>, transform_indices = @transform_2, window_bounds = array<i64: 1, 32>}, {pipeline_mode = #tpu.pipeline_mode<synchronous>, transform_indices = @transform_3, window_bounds = array<i64: 32, 32>}, {pipeline_mode = #tpu.pipeline_mode<synchronous>, transform_indices = @transform_4, window_bounds = array<i64: 1, 32>}, {pipeline_mode = #tpu.pipeline_mode<synchronous>, transform_indices = @transform_5, window_bounds = array<i64: 32, 128>}, {pipeline_mode = #tpu.pipeline_mode<synchronous>, transform_indices = @transform_6, window_bounds = array<i64: 1, 128>}, {transform_indices = @transform_7, window_bounds = array<i64: 16, 128>}, {transform_indices = @transform_8, window_bounds = array<i64: 16, 128>}]} {
    %c0 = arith.constant 0 : index
    %c0_0 = arith.constant 0 : index
    %0 = vector.load %arg1[%c0, %c0_0] : memref<16x16xbf16, #tpu.memory_space<vmem>>, vector<16x16xbf16>
    %c0_1 = arith.constant 0 : index
    %c0_2 = arith.constant 0 : index
    %1 = vector.load %arg2[%c0_1, %c0_2] : memref<16x32xbf16, #tpu.memory_space<vmem>>, vector<16x32xbf16>
    %c0_3 = arith.constant 0 : index
    %c0_4 = arith.constant 0 : index
    %2 = vector.load %arg3[%c0_3, %c0_4] : memref<1x32xf32, #tpu.memory_space<vmem>>, vector<1x32xf32>
    %cst = arith.constant dense<0.000000e+00> : vector<16x32xf32>
    %3 = tpu.matmul %0, %1, %cst {dimension_numbers = #tpu.dot_dimension_numbers<[1], [0], [0], [1], [0, 0, 1, 1], [], []>} : vector<16x16xbf16>, vector<16x32xbf16>, vector<16x32xf32> -> vector<16x32xf32>
    %4 = vector.broadcast %2 : vector<1x32xf32> to vector<16x32xf32>
    %5 = arith.addf %3, %4 : vector<16x32xf32>
    %cst_5 = arith.constant 0.000000e+00 : f32
    %6 = vector.broadcast %cst_5 : f32 to vector<16x32xf32>
    %7 = arith.maximumf %5, %6 : vector<16x32xf32>
    %8 = arith.truncf %7 : vector<16x32xf32> to vector<16x32xbf16>
    %c0_6 = arith.constant 0 : index
    %c0_7 = arith.constant 0 : index
    %9 = vector.load %arg4[%c0_6, %c0_7] : memref<32x32xbf16, #tpu.memory_space<vmem>>, vector<32x32xbf16>
    %c0_8 = arith.constant 0 : index
    %c0_9 = arith.constant 0 : index
    %10 = vector.load %arg5[%c0_8, %c0_9] : memref<1x32xf32, #tpu.memory_space<vmem>>, vector<1x32xf32>
    %cst_10 = arith.constant dense<0.000000e+00> : vector<16x32xf32>
    %11 = tpu.matmul %8, %9, %cst_10 {dimension_numbers = #tpu.dot_dimension_numbers<[1], [0], [0], [1], [0, 0, 1, 1], [], []>} : vector<16x32xbf16>, vector<32x32xbf16>, vector<16x32xf32> -> vector<16x32xf32>
    %12 = vector.broadcast %10 : vector<1x32xf32> to vector<16x32xf32>
    %13 = arith.addf %11, %12 : vector<16x32xf32>
    %cst_11 = arith.constant 0.000000e+00 : f32
    %14 = vector.broadcast %cst_11 : f32 to vector<16x32xf32>
    %15 = arith.maximumf %13, %14 : vector<16x32xf32>
    %16 = arith.truncf %15 : vector<16x32xf32> to vector<16x32xbf16>
    %c0_12 = arith.constant 0 : index
    %c0_13 = arith.constant 0 : index
    %17 = vector.load %arg6[%c0_12, %c0_13] : memref<32x128xbf16, #tpu.memory_space<vmem>>, vector<32x128xbf16>
    %c0_14 = arith.constant 0 : index
    %c0_15 = arith.constant 0 : index
    %18 = vector.load %arg7[%c0_14, %c0_15] : memref<1x128xf32, #tpu.memory_space<vmem>>, vector<1x128xf32>
    %c0_16 = arith.constant 0 : index
    %c0_17 = arith.constant 0 : index
    %19 = vector.load %arg8[%c0_16, %c0_17] : memref<16x128xf32, #tpu.memory_space<vmem>>, vector<16x128xf32>
    %cst_18 = arith.constant dense<0.000000e+00> : vector<16x128xf32>
    %20 = tpu.matmul %16, %17, %cst_18 {dimension_numbers = #tpu.dot_dimension_numbers<[1], [0], [0], [1], [0, 0, 1, 1], [], []>} : vector<16x32xbf16>, vector<32x128xbf16>, vector<16x128xf32> -> vector<16x128xf32>
    %21 = vector.broadcast %18 : vector<1x128xf32> to vector<16x128xf32>
    %22 = arith.addf %20, %21 : vector<16x128xf32>
    %23 = arith.addf %22, %19 : vector<16x128xf32>
    %cst_19 = arith.constant 0.000000e+00 : f32
    %24 = vector.broadcast %cst_19 : f32 to vector<16x128xf32>
    %25 = arith.cmpf oge, %23, %24 : vector<16x128xf32>
    %cst_20 = arith.constant 1.000000e+00 : f32
    %cst_21 = arith.constant 0.000000e+00 : f32
    %26 = vector.broadcast %cst_20 : f32 to vector<16x128xf32>
    %27 = vector.broadcast %cst_21 : f32 to vector<16x128xf32>
    %28 = arith.select %25, %26, %27 : vector<16x128xi1>, vector<16x128xf32>
    %29 = arith.truncf %28 : vector<16x128xf32> to vector<16x128xbf16>
    %c0_22 = arith.constant 0 : index
    %c0_23 = arith.constant 0 : index
    %30 = vector.load %arg9[%c0_22, %c0_23] : memref<16x128xbf16, #tpu.memory_space<vmem>>, vector<16x128xbf16>
    tpu.vector_store %arg9[%c0_22, %c0_23], %29 {strides = array<i32>} : memref<16x128xbf16, #tpu.memory_space<vmem>>, vector<16x128xbf16>,
    return
  }
  func.func @transform_0(%arg0: i32) -> (i32, i32) {
    %c0_i32 = arith.constant 0 : i32
    %c0_i32_0 = arith.constant 0 : i32
    return %arg0, %c0_i32 : i32, i32
  }
  func.func @transform_1(%arg0: i32) -> (i32, i32) {
    %c0_i32 = arith.constant 0 : i32
    %c0_i32_0 = arith.constant 0 : i32
    %c0_i32_1 = arith.constant 0 : i32
    return %c0_i32, %c0_i32_0 : i32, i32
  }
  func.func @transform_2(%arg0: i32) -> (i32, i32) {
    %c0_i32 = arith.constant 0 : i32
    %c0_i32_0 = arith.constant 0 : i32
    %c0_i32_1 = arith.constant 0 : i32
    return %c0_i32, %c0_i32_0 : i32, i32
  }
  func.func @transform_3(%arg0: i32) -> (i32, i32) {
    %c0_i32 = arith.constant 0 : i32
    %c0_i32_0 = arith.constant 0 : i32
    %c0_i32_1 = arith.constant 0 : i32
    return %c0_i32, %c0_i32_0 : i32, i32
  }
  func.func @transform_4(%arg0: i32) -> (i32, i32) {
    %c0_i32 = arith.constant 0 : i32
    %c0_i32_0 = arith.constant 0 : i32
    %c0_i32_1 = arith.constant 0 : i32
    return %c0_i32, %c0_i32_0 : i32, i32
  }
  func.func @transform_5(%arg0: i32) -> (i32, i32) {
    %c0_i32 = arith.constant 0 : i32
    %c0_i32_0 = arith.constant 0 : i32
    %c0_i32_1 = arith.constant 0 : i32
    return %c0_i32, %c0_i32_0 : i32, i32
  }
  func.func @transform_6(%arg0: i32) -> (i32, i32) {
    %c0_i32 = arith.constant 0 : i32
    %c0_i32_0 = arith.constant 0 : i32
    %c0_i32_1 = arith.constant 0 : i32
    return %c0_i32, %c0_i32_0 : i32, i32
  }
  func.func @transform_7(%arg0: i32) -> (i32, i32) {
    %c0_i32 = arith.constant 0 : i32
    %c0_i32_0 = arith.constant 0 : i32
    return %arg0, %c0_i32 : i32, i32
  }
  func.func @transform_8(%arg0: i32) -> (i32, i32) {
    %c0_i32 = arith.constant 0 : i32
    %c0_i32_0 = arith.constant 0 : i32
    return %arg0, %c0_i32 : i32, i32
  }
}

</mosaic_0001>

<llo_original>
// kernel: tpu_custom_call.1
$region0: #{tpu_custom_call.1}
  #allocation0 [shape = 'u32[]', space=smem, size = 0x4, offset = 0x4, fixed_abs, tag = 'smem constant byte address 0x4 - core index']
  #allocation1 [shape = 'u32[72,128]{1,0:T(1,128)}', space=vmem, size = 0x9000, scoped, tag = 'internal scratch']
  %s0 = inlined_call_operand.hbm [shape: bf16[16,16], index: 0, kind: input, shape index: {}]
  %s1 = inlined_call_operand.hbm [shape: bf16[16,32], index: 1, kind: input, shape index: {}]
  %s2 = inlined_call_operand.vmem [shape: f32[1,32], index: 2, kind: input, shape index: {}]
  %s3 = inlined_call_operand.hbm [shape: bf16[32,32], index: 3, kind: input, shape index: {}]
  %s4 = inlined_call_operand.vmem [shape: f32[1,32], index: 4, kind: input, shape index: {}]
  %s5 = inlined_call_operand.hbm [shape: bf16[32,128], index: 5, kind: input, shape index: {}]
  %s6 = inlined_call_operand.vmem [shape: f32[1,128], index: 6, kind: input, shape index: {}]
  %s7 = inlined_call_operand.hbm [shape: f32[16,128], index: 7, kind: input, shape index: {}]
  %s8 = inlined_call_operand.hbm [shape: bf16[16,128], index: 8, kind: output, shape index: {}]
  %s9 = sld [smem:[#allocation0]]
  $region62: #{tpu_custom_call.1} parent=0
    _
  %s11 = ssub.s32 1, %s9
  %s12 = scalar_select 0, %s11, %s9
  $region1: #{tpu_custom_call.1} parent=0
    #allocation2 [shape = 'u8[4096]{0}', space=vmem, size = 0x1000, scoped, tag = 'input window, operand 0, single buffered']
    #allocation3 [shape = 's32[1]{0}', space=sflag, size = 0x4, scoped, tag = 'scoped memory for tpu_custom_call.1']
    #allocation4 [shape = 's32[1]{0}', space=sflag, size = 0x4, scoped, tag = 'scoped memory for tpu_custom_call.1']
    #allocation5 [shape = 'u8[4096]{0}', space=vmem, size = 0x1000, scoped, tag = 'input window, operand 1, single buffered']
    #allocation6 [shape = 's32[1]{0}', space=sflag, size = 0x4, scoped, tag = 'scoped memory for tpu_custom_call.1']
    #allocation7 [shape = 'u8[8192]{0}', space=vmem, size = 0x2000, scoped, tag = 'input window, operand 3, single buffered']
    #allocation8 [shape = 'u8[8192]{0}', space=vmem, size = 0x2000, scoped, tag = 'input window, operand 5, single buffered']
    #allocation9 [shape = 's32[1]{0}', space=sflag, size = 0x4, scoped, tag = 'scoped memory for tpu_custom_call.1']
    #allocation10 [shape = 'u8[8192]{0}', space=vmem, size = 0x2000, scoped, tag = 'input window, operand 7, single buffered']
    #allocation11 [shape = 'u8[4096]{0}', space=vmem, size = 0x1000, scoped, tag = 'output window, operand 0, single buffered']
    %13 = vsyncpa [#allocation3], 0
    %14 = vsyncpa [#allocation6], 0
    %15 = vsyncpa [#allocation9], 0
    %16 = vsyncpa [#allocation4], 0
    // Predicated region
    $region2: #{tpu_custom_call.1} parent=1 // pred_check
      _
    $region3: #{tpu_custom_call.1} parent=1 // pred_check_branch
      %18 = sbr.rel (0) target = $region5
    $region4: #{tpu_custom_call.1} parent=1 // pred_region
      %20 = vsyncadd [#allocation3], 0
      %s21 = sshll.u32 %s0, 4
      %s22 = int_to_ptr.hbm [resolvable:$true] %s21
      %s23 = sshll.u32 [#allocation2], 4
      %s24 = int_to_ptr.vmem [resolvable:$true] %s23
      %29 = dma.hbm_to_vmem [thread:$0]  %s22, 128, %s24, [#allocation3], 64, 64, 4
    $region5: #{tpu_custom_call.1} parent=1 // pred_fallthru
      _
    // Predicated region
    $region6: #{tpu_custom_call.1} parent=1 // pred_check
      _
    $region7: #{tpu_custom_call.1} parent=1 // pred_check_branch
      %31 = sbr.rel (0) target = $region9
    $region8: #{tpu_custom_call.1} parent=1 // pred_region
      %33 = vsyncadd [#allocation6], 0
      %s34 = sshll.u32 %s1, 4
      %s35 = int_to_ptr.hbm [resolvable:$true] %s34
      %s36 = sshll.u32 [#allocation5], 4
      %s37 = int_to_ptr.vmem [resolvable:$true] %s36
      %42 = dma.hbm_to_vmem [thread:$0]  %s35, 128, %s37, [#allocation6], 64, 64, 4
    $region9: #{tpu_custom_call.1} parent=1 // pred_fallthru
      _
    // Predicated region
    $region10: #{tpu_custom_call.1} parent=1 // pred_check
      _
    $region11: #{tpu_custom_call.1} parent=1 // pred_check_branch
      %44 = sbr.rel (0) target = $region13
    $region12: #{tpu_custom_call.1} parent=1 // pred_region
      _
    $region13: #{tpu_custom_call.1} parent=1 // pred_fallthru
      _
    // Predicated region
    $region14: #{tpu_custom_call.1} parent=1 // pred_check
      _
    $region15: #{tpu_custom_call.1} parent=1 // pred_check_branch
      %46 = sbr.rel (0) target = $region17
    $region16: #{tpu_custom_call.1} parent=1 // pred_region
      %48 = vsyncadd [#allocation6], 0
      %s49 = sshll.u32 %s3, 4
      %s50 = int_to_ptr.hbm [resolvable:$true] %s49
      %s51 = sshll.u32 [#allocation7], 4
      %s52 = int_to_ptr.vmem [resolvable:$true] %s51
      %57 = dma.hbm_to_vmem [thread:$0]  %s50, 256, %s52, [#allocation6], 64, 64, 4
    $region17: #{tpu_custom_call.1} parent=1 // pred_fallthru
      _
    // Predicated region
    $region18: #{tpu_custom_call.1} parent=1 // pred_check
      _
    $region19: #{tpu_custom_call.1} parent=1 // pred_check_branch
      %59 = sbr.rel (0) target = $region21
    $region20: #{tpu_custom_call.1} parent=1 // pred_region
      _
    $region21: #{tpu_custom_call.1} parent=1 // pred_fallthru
      _
    // Predicated region
    $region22: #{tpu_custom_call.1} parent=1 // pred_check
      _
    $region23: #{tpu_custom_call.1} parent=1 // pred_check_branch
      %61 = sbr.rel (0) target = $region25
    $region24: #{tpu_custom_call.1} parent=1 // pred_region
      %63 = vsyncadd [#allocation9], 0
      %s64 = sshll.u32 %s5, 4
      %s65 = int_to_ptr.hbm [resolvable:$true] %s64
      %s66 = sshll.u32 [#allocation8], 4
      %s67 = int_to_ptr.vmem [resolvable:$true] %s66
      %72 = dma.hbm_to_vmem [thread:$0]  %s65, 256, %s67, [#allocation9], 64, 64, 4
    $region25: #{tpu_custom_call.1} parent=1 // pred_fallthru
      _
    // Predicated region
    $region26: #{tpu_custom_call.1} parent=1 // pred_check
      _
    $region27: #{tpu_custom_call.1} parent=1 // pred_check_branch
      %74 = sbr.rel (0) target = $region29
    $region28: #{tpu_custom_call.1} parent=1 // pred_region
      _
    $region29: #{tpu_custom_call.1} parent=1 // pred_fallthru
      _
    // Predicated region
    $region30: #{tpu_custom_call.1} parent=1 // pred_check
      _
    $region31: #{tpu_custom_call.1} parent=1 // pred_check_branch
      %76 = sbr.rel (0) target = $region33
    $region32: #{tpu_custom_call.1} parent=1 // pred_region
      %78 = vsyncadd [#allocation9], 0
      %s79 = sshll.u32 %s7, 4
      %s80 = int_to_ptr.hbm [resolvable:$true] %s79
      %s81 = sshll.u32 [#allocation10], 4
      %s82 = int_to_ptr.vmem [resolvable:$true] %s81
      %87 = dma.hbm_to_vmem [thread:$0]  %s80, 256, %s82, [#allocation9], 128, 128, 8
    $region33: #{tpu_custom_call.1} parent=1 // pred_fallthru
      _
    // Predicated region
    $region34: #{tpu_custom_call.1} parent=1 // pred_check
      _
    $region35: #{tpu_custom_call.1} parent=1 // pred_check_branch
      %89 = sbr.rel (0) target = $region37
    $region36: #{tpu_custom_call.1} parent=1 // pred_region
      %91 = dma.done [#allocation3], 128
    $region37: #{tpu_custom_call.1} parent=1 // pred_fallthru
      _
    // Predicated region
    $region38: #{tpu_custom_call.1} parent=1 // pred_check
      _
    $region39: #{tpu_custom_call.1} parent=1 // pred_check_branch
      %93 = sbr.rel (0) target = $region41
    $region40: #{tpu_custom_call.1} parent=1 // pred_region
      %95 = dma.done [#allocation6], 128
    $region41: #{tpu_custom_call.1} parent=1 // pred_fallthru
      _
    // Predicated region
    $region42: #{tpu_custom_call.1} parent=1 // pred_check
      _
    $region43: #{tpu_custom_call.1} parent=1 // pred_check_branch
      %97 = sbr.rel (0) target = $region45
    $region44: #{tpu_custom_call.1} parent=1 // pred_region
      %99 = dma.done [#allocation6], 256
    $region45: #{tpu_custom_call.1} parent=1 // pred_fallthru
      _
    // Predicated region
    $region46: #{tpu_custom_call.1} parent=1 // pred_check
      _
    $region47: #{tpu_custom_call.1} parent=1 // pred_check_branch
      %101 = sbr.rel (0) target = $region49
    $region48: #{tpu_custom_call.1} parent=1 // pred_region
      %103 = dma.done [#allocation9], 256
    $region49: #{tpu_custom_call.1} parent=1 // pred_fallthru
      _
    // Predicated region
    $region50: #{tpu_custom_call.1} parent=1 // pred_check
      _
    $region51: #{tpu_custom_call.1} parent=1 // pred_check_branch
      %105 = sbr.rel (0) target = $region53
    $region52: #{tpu_custom_call.1} parent=1 // pred_region
      %107 = dma.done [#allocation9], 256
    $region53: #{tpu_custom_call.1} parent=1 // pred_fallthru
      _
    %v109 = vld [vmem:[#allocation2] sm:$0xf]
    %v110 = vld [vmem:[#allocation2 + $0x4] sm:$0xf]
    %v111 = vld [vmem:[#allocation5] sm:$0xf]
    %v112 = vld [vmem:[#allocation5 + $0x4] sm:$0xf]
    %v113 = vld [vmem:[%s2] sm:$0x1]
    %v115 = vperm.slane %v113, 0
    %v119 = vunpack.c.l.b16 %v109
    %v120 = vunpack.c.l.b16 %v110
    %v121 = vpack.c.b16 %v120, %v119
    %v124 = vunpack.c.l.b16 %v111
    %v125 = vunpack.c.l.b16 %v112
    %v126 = vpack.c.b16 %v125, %v124
    %vm128 = vcmask 130048
    %v130 = vsel %vm128, %v121, 0
    %132 = vmatpush.bf16.msra.mxu0 0
    %133 = vmatpush.bf16.msra.mxu0 0
    %134 = vmatpush.bf16.msra.mxu0 0
    %135 = vmatpush.bf16.msra.mxu0 0
    %136 = vmatpush.bf16.msra.mxu0 0
    %137 = vmatpush.bf16.msra.mxu0 0
    %138 = vmatpush.bf16.msra.mxu0 0
    %139 = vmatpush.bf16.msra.mxu0 %v126
    %140 = vmatmul.bf16.gmra.mxu0 %v130
    %v141 = vpop.f32.mrf.mxu0
    %v142 = vadd.f32 %v115, %v141
    %v143 = vpop.f32.mrf.mxu0
    %v144 = vadd.f32 %v115, %v143
    %145 = vdwg.mxu0
    %v146 = vmax.f32 %v142, 0.0
    %v147 = vmax.f32 %v144, 0.0
    %v148 = vpack.c.bf16 %v147, %v146
    %v149 = vld [vmem:[#allocation7] sm:$0xf]
    %v150 = vld [vmem:[#allocation7 + $0x4] sm:$0xf]
    %v151 = vld [vmem:[#allocation7 + $0x8] sm:$0xf]
    %v152 = vld [vmem:[#allocation7 + $0xc] sm:$0xf]
    %v153 = vld [vmem:[%s4] sm:$0x1]
    %v155 = vperm.slane %v153, 0
    %v161 = vunpack.c.l.b16 %v149
    %v162 = vunpack.c.l.b16 %v150
    %v163 = vunpack.c.l.b16 %v151
    %v164 = vunpack.c.l.b16 %v152
    %v165 = vpack.c.b16 %v162, %v161
    %v166 = vpack.c.b16 %v164, %v163
    %vm169 = vcmask 261120
    %v171 = vsel %vm169, %v148, 0
    %173 = vmatpush.bf16.msra.mxu0 0
    %174 = vmatpush.bf16.msra.mxu0 0
    %175 = vmatpush.bf16.msra.mxu0 0
    %176 = vmatpush.bf16.msra.mxu0 0
    %177 = vmatpush.bf16.msra.mxu0 0
    %178 = vmatpush.bf16.msra.mxu0 0
    %179 = vmatpush.bf16.msra.mxu0 %v166
    %180 = vmatpush.bf16.msra.mxu0 %v165
    %181 = vmatmul.bf16.gmra.mxu0 %v171
    %v182 = vpop.f32.mrf.mxu0
    %v183 = vadd.f32 %v155, %v182
    %v184 = vpop.f32.mrf.mxu0
    %v185 = vadd.f32 %v155, %v184
    %186 = vdwg.mxu0
    %v187 = vmax.f32 %v183, 0.0
    %v188 = vmax.f32 %v185, 0.0
    %v189 = vpack.c.bf16 %v188, %v187
    %v190 = vld [vmem:[#allocation8] sm:$0xf]
    %v191 = vld [vmem:[#allocation8 + $0x4] sm:$0xf]
    %v192 = vld [vmem:[#allocation8 + $0x8] sm:$0xf]
    %v193 = vld [vmem:[#allocation8 + $0xc] sm:$0xf]
    %v194 = vld [vmem:[%s6] sm:$0x1]
    %v195 = vld [vmem:[#allocation10] sm:$0xff]
    %v196 = vld [vmem:[#allocation10 + $0x8] sm:$0xff]
    %v198 = vperm.slane %v194, 0
    %v204 = vunpack.c.l.b16 %v190
    %v205 = vunpack.c.l.b16 %v191
    %v206 = vunpack.c.l.b16 %v192
    %v207 = vunpack.c.l.b16 %v193
    %v208 = vpack.c.b16 %v205, %v204
    %v209 = vpack.c.b16 %v207, %v206
    %v213 = vsel %vm169, %v189, 0
    %215 = vmatpush.bf16.msra.mxu0 0
    %216 = vmatpush.bf16.msra.mxu0 0
    %217 = vmatpush.bf16.msra.mxu0 0
    %218 = vmatpush.bf16.msra.mxu0 0
    %219 = vmatpush.bf16.msra.mxu0 0
    %220 = vmatpush.bf16.msra.mxu0 0
    %221 = vmatpush.bf16.msra.mxu0 %v209
    %222 = vmatpush.bf16.msra.mxu0 %v208
    %223 = vmatmul.bf16.gmra.mxu0 %v213
    %v224 = vpop.f32.mrf.mxu0
    %v225 = vadd.f32 %v198, %v224
    %v226 = vpop.f32.mrf.mxu0
    %v227 = vadd.f32 %v198, %v226
    %228 = vdwg.mxu0
    %v229 = vadd.f32 %v225, %v195
    %v230 = vadd.f32 %v227, %v196
    %vm231 = vcmp.ge.f32.partialorder %v229, 0.0
    %vm232 = vcmp.ge.f32.partialorder %v230, 0.0
    %v233 = vsel %vm231, 1.0, 0.0
    %v234 = vsel %vm232, 1.0, 0.0
    %v235 = vpack.c.bf16 %v233, %v233
    %v236 = vpack.c.bf16 %v234, %v234
    %237 = vst [vmem:[#allocation11] sm:$0xf] %v235
    %238 = vst [vmem:[#allocation11 + $0x4] sm:$0xf] %v236
    // Predicated region
    $region54: #{tpu_custom_call.1} parent=1 // pred_check
      _
    $region55: #{tpu_custom_call.1} parent=1 // pred_check_branch
      %240 = sbr.rel (0) target = $region57
    $region56: #{tpu_custom_call.1} parent=1 // pred_region
      %242 = vsyncadd [#allocation4], 0
      %s243 = sshll.u32 [#allocation11], 4
      %s244 = int_to_ptr.vmem [resolvable:$true] %s243
      %s245 = sshll.u32 %s8, 4
      %s246 = int_to_ptr.hbm [resolvable:$true] %s245
      %251 = dma.vmem_to_hbm [thread:$0]  %s244, 128, %s246, [#allocation4], 64, 64, 4
    $region57: #{tpu_custom_call.1} parent=1 // pred_fallthru
      _
    // Predicated region
    $region58: #{tpu_custom_call.1} parent=1 // pred_check
      _
    $region59: #{tpu_custom_call.1} parent=1 // pred_check_branch
      %253 = sbr.rel (0) target = $region61
    $region60: #{tpu_custom_call.1} parent=1 // pred_region
      %255 = dma.done [#allocation4], 128
    $region61: #{tpu_custom_call.1} parent=1 // pred_fallthru
      _
    %256 = vsyncpa [#allocation3], 1
    %257 = vsyncpa [#allocation6], 1
    %258 = vsyncpa [#allocation9], 1
    %259 = vsyncpa [#allocation4], 1

</llo_original>
